<compile_context>
chip_gen: v7x
topology: tpu7x:2x2x1
jax: 0.10.0
libtpu: 0.0.40
codegen_flags: <defaults>
</compile_context>

<pallas_src>
import jax
import jax.numpy as jnp
from jax.experimental import pallas as pl
from jax.experimental.pallas import tpu as pltpu


_LANE = 1024       # lane-dense slab width (large multiple of 128)
_TILE_ROWS = 512   # 512 x 1024 f32 out-tile = 2 MiB -> ~85% of HBM roofline


def _cast_kernel(x_ref, o_ref):
    # Memory-bound copy + cast; the cast is free VPU filler under the DMAs.
    o_ref[...] = x_ref[...].astype(o_ref.dtype)


def _cast_slab(slab: jax.Array, tile_rows: int) -> jax.Array:
    rows, lane = slab.shape
    grid = (rows // tile_rows,)
    return pl.pallas_call(
        _cast_kernel,
        out_shape=jax.ShapeDtypeStruct((rows, lane), jnp.float32),
        grid=grid,
        in_specs=[pl.BlockSpec((tile_rows, lane), lambda i: (i, 0))],
        out_specs=pl.BlockSpec((tile_rows, lane), lambda i: (i, 0)),
        compiler_params=pltpu.CompilerParams(
            dimension_semantics=("parallel",),
            vmem_limit_bytes=32 * 1024 * 1024,
        ),
    )(slab)


def hidden_state_policy_forward(hs_raw: jax.Array) -> jax.Array:
    """Pallas equivalent of HiddenStatePolicy.forward's tensor output.

    hs_raw: [B, ...] per-actor raw hidden-state arrays (any numeric dtype,
            mirroring the arrays returned by model.get_hidden_state()).
    returns: [B, prod(rest)] float32 stacked hidden states.
    """
    # TODO(synk): self.model.take_action(**x), reset(), save/restore_inner_state
    # are host-side python-object logic with no tensor compute; omitted here.
    B = hs_raw.shape[0]
    D = 1
    for s in hs_raw.shape[1:]:
        D *= s

    # per-actor .reshape(-1) + stack(dim=0) == row-major reshape(B, D).
    if hs_raw.dtype == jnp.float32:
        # Already float32: pure layout, skip the Pallas call / HBM round-trip.
        return hs_raw.reshape(B, D)

    total = B * D

    # Lane-dense slab layout; pad so the tile grid divides evenly.
    lane = _LANE if total >= _LANE else 128
    rows = -(-total // lane)                       # ceil
    if rows <= _TILE_ROWS:
        tile_rows = rows                           # full-extent block: allowed
        padded_rows = rows
    else:
        tile_rows = _TILE_ROWS                     # 512 (multiple of 8)
        padded_rows = -(-rows // tile_rows) * tile_rows
    padded_total = padded_rows * lane

    flat = hs_raw.reshape(-1)
    if padded_total != total:
        flat = jnp.pad(flat, (0, padded_total - total))
    slab = flat.reshape(padded_rows, lane)

    out_slab = _cast_slab(slab, tile_rows)

    out_flat = out_slab.reshape(-1)
    if padded_total != total:
        out_flat = out_flat[:total]
    return out_flat.reshape(B, D)


if __name__ == "__main__":
    key = jax.random.PRNGKey(0)

    # Primary example: 2 actors, per-actor hidden state (4, 16, 16) -> D=1024.
    B, C, H, W = 2, 4, 16, 16
    hs_raw = jax.random.randint(key, (B, C, H, W), minval=0, maxval=10,
                                dtype=jnp.int32)
    hs = jax.block_until_ready(hidden_state_policy_forward(hs_raw))
    ref = hs_raw.reshape(B, C * H * W).astype(jnp.float32)
    assert hs.shape == (B, C * H * W)
    assert hs.dtype == jnp.float32
    assert bool(jnp.all(hs == ref))

    # Ragged total + narrow dtype: exercises padding path and in-kernel cast.
    k2 = jax.random.fold_in(key, 1)
    hs_raw2 = jax.random.randint(k2, (2, 3, 5, 7), minval=-8, maxval=8,
                                 dtype=jnp.int32).astype(jnp.int8)
    hs2 = jax.block_until_ready(hidden_state_policy_forward(hs_raw2))
    ref2 = hs_raw2.reshape(2, 3 * 5 * 7).astype(jnp.float32)
    assert hs2.shape == (2, 3 * 5 * 7) and hs2.dtype == jnp.float32
    assert bool(jnp.all(hs2 == ref2))

    # float32 fast path: pure reshape, no Pallas call.
    k3 = jax.random.fold_in(key, 2)
    hs_raw3 = jax.random.normal(k3, (B, C, H, W), dtype=jnp.float32)
    hs3 = jax.block_until_ready(hidden_state_policy_forward(hs_raw3))
    assert bool(jnp.all(hs3 == hs_raw3.reshape(B, C * H * W)))

    print("KERNEL_OK")
</pallas_src>

<mosaic_0001>
module attributes {stable_mosaic.version = 11 : i64} {
  func.func @_cast_kernel(%arg0: i32, %arg1: memref<2x1024xi32, #tpu.memory_space<vmem>>, %arg2: memref<2x1024xf32, #tpu.memory_space<vmem>>) attributes {dimension_semantics = [#tpu.dimension_semantics<parallel>], iteration_bounds = array<i64: 1>, scalar_prefetch = 0 : i64, scratch_operands = 0 : i64, tpu.core_type = #tpu.core_type<tc>, window_params = [{transform_indices = @transform_0, window_bounds = array<i64: 2, 1024>}, {transform_indices = @transform_1, window_bounds = array<i64: 2, 1024>}]} {
    %c0 = arith.constant 0 : index
    %c0_0 = arith.constant 0 : index
    %0 = vector.load %arg1[%c0, %c0_0] : memref<2x1024xi32, #tpu.memory_space<vmem>>, vector<2x1024xi32>
    %1 = arith.sitofp %0 : vector<2x1024xi32> to vector<2x1024xf32>
    %c0_1 = arith.constant 0 : index
    %c0_2 = arith.constant 0 : index
    %2 = vector.load %arg2[%c0_1, %c0_2] : memref<2x1024xf32, #tpu.memory_space<vmem>>, vector<2x1024xf32>
    tpu.vector_store %arg2[%c0_1, %c0_2], %1 {strides = array<i32>} : memref<2x1024xf32, #tpu.memory_space<vmem>>, vector<2x1024xf32>,
    return
  }
  func.func @transform_0(%arg0: i32) -> (i32, i32) {
    %c0_i32 = arith.constant 0 : i32
    %c0_i32_0 = arith.constant 0 : i32
    return %arg0, %c0_i32 : i32, i32
  }
  func.func @transform_1(%arg0: i32) -> (i32, i32) {
    %c0_i32 = arith.constant 0 : i32
    %c0_i32_0 = arith.constant 0 : i32
    return %arg0, %c0_i32 : i32, i32
  }
}

</mosaic_0001>

<llo_original>
// kernel: tpu_custom_call.1
$region0: #{tpu_custom_call.1}
  #allocation0 [shape = 'u32[]', space=smem, size = 0x4, offset = 0x4, fixed_abs, tag = 'smem constant byte address 0x4 - core index']
  #allocation1 [shape = 'u32[144,128]{1,0:T(1,128)}', space=vmem, size = 0x12000, scoped, tag = 'internal scratch']
  %s0 = inlined_call_operand.hbm [shape: s32[2,1024], index: 0, kind: input, shape index: {}]
  %s1 = inlined_call_operand.hbm [shape: f32[2,1024], index: 1, kind: output, shape index: {}]
  %s2 = sld [smem:[#allocation0]]
  $region18: #{tpu_custom_call.1} parent=0
    _
  %s4 = ssub.s32 1, %s2
  %s5 = scalar_select 0, %s4, %s2
  $region1: #{tpu_custom_call.1} parent=0
    #allocation2 [shape = 'u8[8192]{0}', space=vmem, size = 0x2000, scoped, tag = 'input window, operand 0, single buffered']
    #allocation3 [shape = 's32[1]{0}', space=sflag, size = 0x4, scoped, tag = 'scoped memory for tpu_custom_call.1']
    #allocation4 [shape = 's32[1]{0}', space=sflag, size = 0x4, scoped, tag = 'scoped memory for tpu_custom_call.1']
    #allocation5 [shape = 'u8[8192]{0}', space=vmem, size = 0x2000, scoped, tag = 'output window, operand 0, single buffered']
    %6 = vsyncpa [#allocation3], 0
    %7 = vsyncpa [#allocation4], 0
    // Predicated region
    $region2: #{tpu_custom_call.1} parent=1 // pred_check
      _
    $region3: #{tpu_custom_call.1} parent=1 // pred_check_branch
      %9 = sbr.rel (0) target = $region5
    $region4: #{tpu_custom_call.1} parent=1 // pred_region
      %s11 = ssub.s32 256, 256
      %12 = vsyncadd [#allocation3], %s11
      %s14 = sshll.u32 [#allocation2], 4
      %s15 = int_to_ptr.vmem [resolvable:$true] %s14
      %17 = dma.hbm_to_vmem [thread:$0]  %s0, 256, %s15, [#allocation3]
    $region5: #{tpu_custom_call.1} parent=1 // pred_fallthru
      _
    // Predicated region
    $region6: #{tpu_custom_call.1} parent=1 // pred_check
      _
    $region7: #{tpu_custom_call.1} parent=1 // pred_check_branch
      %19 = sbr.rel (0) target = $region9
    $region8: #{tpu_custom_call.1} parent=1 // pred_region
      %20 = dma.done [#allocation3], 256
    $region9: #{tpu_custom_call.1} parent=1 // pred_fallthru
      _
    %v21 = vld [vmem:[#allocation2] sm:$0xff]
    %v22 = vld [vmem:[#allocation2 + $0x8] sm:$0xff]
    %v23 = vcvt.s32.f32 %v21
    %v24 = vcvt.s32.f32 %v22
    %25 = vst [vmem:[#allocation5] sm:$0xff] %v23
    %26 = vst [vmem:[#allocation5 + $0x8] sm:$0xff] %v24
    // Predicated region
    $region10: #{tpu_custom_call.1} parent=1 // pred_check
      _
    $region11: #{tpu_custom_call.1} parent=1 // pred_check_branch
      %28 = sbr.rel (0) target = $region13
    $region12: #{tpu_custom_call.1} parent=1 // pred_region
      %s30 = ssub.s32 256, 256
      %31 = vsyncadd [#allocation4], %s30
      %s33 = sshll.u32 [#allocation5], 4
      %s34 = int_to_ptr.vmem [resolvable:$true] %s33
      %36 = dma.vmem_to_hbm [thread:$0]  %s34, 256, %s1, [#allocation4]
    $region13: #{tpu_custom_call.1} parent=1 // pred_fallthru
      _
    // Predicated region
    $region14: #{tpu_custom_call.1} parent=1 // pred_check
      _
    $region15: #{tpu_custom_call.1} parent=1 // pred_check_branch
      %38 = sbr.rel (0) target = $region17
    $region16: #{tpu_custom_call.1} parent=1 // pred_region
      %39 = dma.done [#allocation4], 256
    $region17: #{tpu_custom_call.1} parent=1 // pred_fallthru
      _
    %40 = vsyncpa [#allocation3], 1
    %41 = vsyncpa [#allocation4], 1

</llo_original>
